<compile_context>
chip_gen: v7x
topology: tpu7x:2x2x1
jax: 0.10.0
libtpu: 0.0.40
codegen_flags: <defaults>
</compile_context>

<pallas_src>
import functools

import jax
import jax.numpy as jnp
from jax.experimental import pallas as pl
from jax.experimental.pallas import tpu as pltpu


def _round_up(x, m):
    return (x + m - 1) // m * m


def _make_kernel(has_flow, eps):
    """Fused dense + residual (+flow) + LayerNorm kernel."""

    def kernel(*refs):
        if has_flow:
            (h_ref, w_ref, b_ref, res_ref, flow_ref,
             gamma_ref, beta_ref, out_ref, acc_ref) = refs
        else:
            (h_ref, w_ref, b_ref, res_ref,
             gamma_ref, beta_ref, out_ref, acc_ref) = refs
            flow_ref = None

        k = pl.program_id(1)

        @pl.when(k == 0)
        def _():
            acc_ref[...] = jnp.zeros_like(acc_ref)

        # (tm, tk) @ (tk, N) on the MXU, f32 accumulation.
        acc_ref[...] += jnp.dot(h_ref[...], w_ref[...],
                                preferred_element_type=jnp.float32)

        @pl.when(k == pl.num_programs(1) - 1)
        def _():
            x = acc_ref[...] + b_ref[...].astype(jnp.float32)
            # TODO(synk): training-mode dropout (stochastic) not implemented;
            # eval-mode nn.Dropout is the identity.
            x = x + res_ref[...].astype(jnp.float32)
            if flow_ref is not None:
                x = x + flow_ref[...].astype(jnp.float32)
            mean = jnp.mean(x, axis=-1, keepdims=True)
            xc = x - mean
            var = jnp.mean(xc * xc, axis=-1, keepdims=True)
            inv = jax.lax.rsqrt(var + eps)
            y = (xc * inv) * gamma_ref[...].astype(jnp.float32) \
                + beta_ref[...].astype(jnp.float32)
            out_ref[...] = y.astype(out_ref.dtype)

    return kernel


def roberta_output_forward(hidden_states, input_tensor, params, flow=None,
                           *, eps=1e-5, tm=128, tk=512):
    """RobertaOutput.forward.

    hidden_states: (..., intermediate_size)
    input_tensor : (..., hidden_size)
    params       : (w_t (K, N), b (N,), gamma (N,), beta (N,))  with
                   w_t = dense.weight.T (pre-transposed for the MXU).
    flow         : optional (..., hidden_size)
    """
    w_t, b, gamma, beta = params
    K, N = w_t.shape
    lead_shape = input_tensor.shape[:-1]
    out_dtype = input_tensor.dtype

    assert K % 128 == 0 and N % 128 == 0, "pad intermediate/hidden to 128"

    h2 = hidden_states.reshape(-1, K)
    r2 = input_tensor.reshape(-1, N)
    f2 = None if flow is None else flow.reshape(-1, N)
    M = h2.shape[0]

    tm = min(tm, _round_up(M, 8))
    Mp = _round_up(M, tm)
    tk = min(tk, K)
    while K % tk:
        tk //= 2

    if Mp != M:
        pad = [(0, Mp - M), (0, 0)]
        h2 = jnp.pad(h2, pad)
        r2 = jnp.pad(r2, pad)
        if f2 is not None:
            f2 = jnp.pad(f2, pad)

    b2 = b.reshape(1, N)
    g2 = gamma.reshape(1, N)
    be2 = beta.reshape(1, N)

    has_flow = f2 is not None
    grid = (Mp // tm, K // tk)

    in_specs = [
        pl.BlockSpec((tm, tk), lambda i, k: (i, k)),   # hidden_states tile
        pl.BlockSpec((tk, N), lambda i, k: (k, 0)),    # weight tile
        pl.BlockSpec((1, N), lambda i, k: (0, 0)),     # bias
        pl.BlockSpec((tm, N), lambda i, k: (i, 0)),    # residual (input_tensor)
    ]
    args = [h2, w_t, b2, r2]
    if has_flow:
        in_specs.append(pl.BlockSpec((tm, N), lambda i, k: (i, 0)))
        args.append(f2)
    in_specs += [
        pl.BlockSpec((1, N), lambda i, k: (0, 0)),     # LayerNorm gamma
        pl.BlockSpec((1, N), lambda i, k: (0, 0)),     # LayerNorm beta
    ]
    args += [g2, be2]

    out = pl.pallas_call(
        _make_kernel(has_flow, eps),
        out_shape=jax.ShapeDtypeStruct((Mp, N), out_dtype),
        grid_spec=pltpu.PrefetchScalarGridSpec(
            num_scalar_prefetch=0,
            grid=grid,
            in_specs=in_specs,
            out_specs=pl.BlockSpec((tm, N), lambda i, k: (i, 0)),
            scratch_shapes=[pltpu.VMEM((tm, N), jnp.float32)],
        ),
        compiler_params=pltpu.CompilerParams(
            dimension_semantics=("parallel", "arbitrary")),
    )(*args)

    out = out[:M]
    return out.reshape(*lead_shape, N)


# ----------------------- pure-JAX reference (no Pallas) ----------------------
def roberta_output_reference(hidden_states, input_tensor, params, flow=None,
                             eps=1e-5):
    w_t, b, gamma, beta = params
    x = hidden_states @ w_t + b
    x = x + input_tensor
    if flow is not None:
        x = x + flow
    mean = jnp.mean(x, axis=-1, keepdims=True)
    var = jnp.mean((x - mean) ** 2, axis=-1, keepdims=True)
    return (x - mean) * jax.lax.rsqrt(var + eps) * gamma + beta


if __name__ == "__main__":
    B, S, HIDDEN, INTER = 2, 8, 128, 512   # hidden_size=128, intermediate=4x
    EPS = 1e-5

    key = jax.random.PRNGKey(0)
    kh, ki, kf, kw, kb, kg, kbe = jax.random.split(key, 7)
    hidden_states = jax.random.normal(kh, (B, S, INTER), jnp.float32)
    input_tensor = jax.random.normal(ki, (B, S, HIDDEN), jnp.float32)
    flow = jax.random.normal(kf, (B, S, HIDDEN), jnp.float32)

    bound = 1.0 / (INTER ** 0.5)
    w_t = jax.random.uniform(kw, (INTER, HIDDEN), jnp.float32, -bound, bound)
    b = jax.random.uniform(kb, (HIDDEN,), jnp.float32, -bound, bound)
    gamma = 1.0 + 0.1 * jax.random.normal(kg, (HIDDEN,), jnp.float32)
    beta = 0.1 * jax.random.normal(kbe, (HIDDEN,), jnp.float32)
    params = (w_t, b, gamma, beta)

    fwd = jax.jit(functools.partial(roberta_output_forward, eps=EPS))
    out = fwd(hidden_states, input_tensor, params)            # flow=None path
    out_flow = fwd(hidden_states, input_tensor, params, flow)  # flow path
    jax.block_until_ready((out, out_flow))

    ref = roberta_output_reference(hidden_states, input_tensor, params,
                                   None, EPS)
    ref_flow = roberta_output_reference(hidden_states, input_tensor, params,
                                        flow, EPS)
    assert out.shape == (B, S, HIDDEN), out.shape
    assert out_flow.shape == (B, S, HIDDEN), out_flow.shape
    assert jnp.allclose(out, ref, atol=1e-4, rtol=1e-4)
    assert jnp.allclose(out_flow, ref_flow, atol=1e-4, rtol=1e-4)
    print("KERNEL_OK")
</pallas_src>

<mosaic_0001>
module attributes {stable_mosaic.version = 11 : i64} {
  func.func @kernel(%arg0: i32, %arg1: i32, %arg2: memref<16x512xf32, #tpu.memory_space<vmem>>, %arg3: memref<512x128xf32, #tpu.memory_space<vmem>>, %arg4: memref<1x128xf32, #tpu.memory_space<vmem>>, %arg5: memref<16x128xf32, #tpu.memory_space<vmem>>, %arg6: memref<1x128xf32, #tpu.memory_space<vmem>>, %arg7: memref<1x128xf32, #tpu.memory_space<vmem>>, %arg8: memref<16x128xf32, #tpu.memory_space<vmem>>, %arg9: memref<16x128xf32, #tpu.memory_space<vmem>>) attributes {dimension_semantics = [#tpu.dimension_semantics<parallel>, #tpu.dimension_semantics<arbitrary>], iteration_bounds = array<i64: 1, 1>, scalar_prefetch = 0 : i64, scratch_operands = 1 : i64, tpu.core_type = #tpu.core_type<tc>, window_params = [{transform_indices = @transform_0, window_bounds = array<i64: 16, 512>}, {transform_indices = @transform_1, window_bounds = array<i64: 512, 128>}, {pipeline_mode = #tpu.pipeline_mode<synchronous>, transform_indices = @transform_2, window_bounds = array<i64: 1, 128>}, {transform_indices = @transform_3, window_bounds = array<i64: 16, 128>}, {pipeline_mode = #tpu.pipeline_mode<synchronous>, transform_indices = @transform_4, window_bounds = array<i64: 1, 128>}, {pipeline_mode = #tpu.pipeline_mode<synchronous>, transform_indices = @transform_5, window_bounds = array<i64: 1, 128>}, {transform_indices = @transform_6, window_bounds = array<i64: 16, 128>}]} {
    %c0_i32 = arith.constant 0 : i32
    %0 = arith.cmpi eq, %arg1, %c0_i32 : i32
    %1 = arith.extui %0 : i1 to i32
    %c0_i32_0 = arith.constant 0 : i32
    %2 = arith.cmpi ne, %1, %c0_i32_0 : i32
    scf.if %2 {
      %cst_10 = arith.constant 0.000000e+00 : f32
      %12 = vector.broadcast %cst_10 : f32 to vector<16x128xf32>
      %c0_11 = arith.constant 0 : index
      %c0_12 = arith.constant 0 : index
      %13 = vector.load %arg9[%c0_11, %c0_12] : memref<16x128xf32, #tpu.memory_space<vmem>>, vector<16x128xf32>
      tpu.vector_store %arg9[%c0_11, %c0_12], %12 {strides = array<i32>} : memref<16x128xf32, #tpu.memory_space<vmem>>, vector<16x128xf32>,
    } else {
    }
    %c0 = arith.constant 0 : index
    %c0_1 = arith.constant 0 : index
    %3 = vector.load %arg9[%c0, %c0_1] : memref<16x128xf32, #tpu.memory_space<vmem>>, vector<16x128xf32>
    %c0_2 = arith.constant 0 : index
    %c0_3 = arith.constant 0 : index
    %4 = vector.load %arg2[%c0_2, %c0_3] : memref<16x512xf32, #tpu.memory_space<vmem>>, vector<16x512xf32>
    %c0_4 = arith.constant 0 : index
    %c0_5 = arith.constant 0 : index
    %5 = vector.load %arg3[%c0_4, %c0_5] : memref<512x128xf32, #tpu.memory_space<vmem>>, vector<512x128xf32>
    %cst = arith.constant dense<0.000000e+00> : vector<16x128xf32>
    %6 = tpu.matmul %4, %5, %cst {dimension_numbers = #tpu.dot_dimension_numbers<[1], [0], [0], [1], [0, 0, 1, 1], [], []>} : vector<16x512xf32>, vector<512x128xf32>, vector<16x128xf32> -> vector<16x128xf32>
    %7 = arith.addf %3, %6 : vector<16x128xf32>
    %c0_6 = arith.constant 0 : index
    %c0_7 = arith.constant 0 : index
    %8 = vector.load %arg9[%c0_6, %c0_7] : memref<16x128xf32, #tpu.memory_space<vmem>>, vector<16x128xf32>
    tpu.vector_store %arg9[%c0_6, %c0_7], %7 {strides = array<i32>} : memref<16x128xf32, #tpu.memory_space<vmem>>, vector<16x128xf32>,
    %c0_i32_8 = arith.constant 0 : i32
    %9 = arith.cmpi eq, %arg1, %c0_i32_8 : i32
    %10 = arith.extui %9 : i1 to i32
    %c0_i32_9 = arith.constant 0 : i32
    %11 = arith.cmpi ne, %10, %c0_i32_9 : i32
    scf.if %11 {
      %c0_10 = arith.constant 0 : index
      %c0_11 = arith.constant 0 : index
      %12 = vector.load %arg9[%c0_10, %c0_11] : memref<16x128xf32, #tpu.memory_space<vmem>>, vector<16x128xf32>
      %c0_12 = arith.constant 0 : index
      %c0_13 = arith.constant 0 : index
      %13 = vector.load %arg4[%c0_12, %c0_13] : memref<1x128xf32, #tpu.memory_space<vmem>>, vector<1x128xf32>
      %14 = vector.broadcast %13 : vector<1x128xf32> to vector<16x128xf32>
      %15 = arith.addf %12, %14 : vector<16x128xf32>
      %c0_14 = arith.constant 0 : index
      %c0_15 = arith.constant 0 : index
      %16 = vector.load %arg5[%c0_14, %c0_15] : memref<16x128xf32, #tpu.memory_space<vmem>>, vector<16x128xf32>
      %17 = arith.addf %15, %16 : vector<16x128xf32>
      %cst_16 = arith.constant dense<0.000000e+00> : vector<16xf32>
      %18 = vector.multi_reduction <add>, %17, %cst_16 [1] : vector<16x128xf32> to vector<16xf32>
      %19 = vector.shape_cast %18 : vector<16xf32> to vector<16x1xf32>
      %cst_17 = arith.constant 1.280000e+02 : f32
      %20 = vector.broadcast %cst_17 : f32 to vector<16x1xf32>
      %21 = arith.divf %19, %20 : vector<16x1xf32>
      %22 = vector.broadcast %21 : vector<16x1xf32> to vector<16x128xf32>
      %23 = arith.subf %17, %22 : vector<16x128xf32>
      %24 = arith.mulf %23, %23 : vector<16x128xf32>
      %cst_18 = arith.constant dense<0.000000e+00> : vector<16xf32>
      %25 = vector.multi_reduction <add>, %24, %cst_18 [1] : vector<16x128xf32> to vector<16xf32>
      %26 = vector.shape_cast %25 : vector<16xf32> to vector<16x1xf32>
      %cst_19 = arith.constant 1.280000e+02 : f32
      %27 = vector.broadcast %cst_19 : f32 to vector<16x1xf32>
      %28 = arith.divf %26, %27 : vector<16x1xf32>
      %cst_20 = arith.constant 9.99999974E-6 : f32
      %29 = vector.broadcast %cst_20 : f32 to vector<16x1xf32>
      %30 = arith.addf %28, %29 : vector<16x1xf32>
      %31 = math.rsqrt %30 : vector<16x1xf32>
      %32 = vector.broadcast %31 : vector<16x1xf32> to vector<16x128xf32>
      %33 = arith.mulf %23, %32 : vector<16x128xf32>
      %c0_21 = arith.constant 0 : index
      %c0_22 = arith.constant 0 : index
      %34 = vector.load %arg6[%c0_21, %c0_22] : memref<1x128xf32, #tpu.memory_space<vmem>>, vector<1x128xf32>
      %35 = vector.broadcast %34 : vector<1x128xf32> to vector<16x128xf32>
      %36 = arith.mulf %33, %35 : vector<16x128xf32>
      %c0_23 = arith.constant 0 : index
      %c0_24 = arith.constant 0 : index
      %37 = vector.load %arg7[%c0_23, %c0_24] : memref<1x128xf32, #tpu.memory_space<vmem>>, vector<1x128xf32>
      %38 = vector.broadcast %37 : vector<1x128xf32> to vector<16x128xf32>
      %39 = arith.addf %36, %38 : vector<16x128xf32>
      %c0_25 = arith.constant 0 : index
      %c0_26 = arith.constant 0 : index
      %40 = vector.load %arg8[%c0_25, %c0_26] : memref<16x128xf32, #tpu.memory_space<vmem>>, vector<16x128xf32>
      tpu.vector_store %arg8[%c0_25, %c0_26], %39 {strides = array<i32>} : memref<16x128xf32, #tpu.memory_space<vmem>>, vector<16x128xf32>,
    } else {
    }
    return
  }
  func.func @transform_0(%arg0: i32, %arg1: i32) -> (i32, i32) {
    %c0_i32 = arith.constant 0 : i32
    return %arg0, %arg1 : i32, i32
  }
  func.func @transform_1(%arg0: i32, %arg1: i32) -> (i32, i32) {
    %c0_i32 = arith.constant 0 : i32
    %c0_i32_0 = arith.constant 0 : i32
    return %arg1, %c0_i32 : i32, i32
  }
  func.func @transform_2(%arg0: i32, %arg1: i32) -> (i32, i32) {
    %c0_i32 = arith.constant 0 : i32
    %c0_i32_0 = arith.constant 0 : i32
    %c0_i32_1 = arith.constant 0 : i32
    return %c0_i32, %c0_i32_0 : i32, i32
  }
  func.func @transform_3(%arg0: i32, %arg1: i32) -> (i32, i32) {
    %c0_i32 = arith.constant 0 : i32
    %c0_i32_0 = arith.constant 0 : i32
    return %arg0, %c0_i32 : i32, i32
  }
  func.func @transform_4(%arg0: i32, %arg1: i32) -> (i32, i32) {
    %c0_i32 = arith.constant 0 : i32
    %c0_i32_0 = arith.constant 0 : i32
    %c0_i32_1 = arith.constant 0 : i32
    return %c0_i32, %c0_i32_0 : i32, i32
  }
  func.func @transform_5(%arg0: i32, %arg1: i32) -> (i32, i32) {
    %c0_i32 = arith.constant 0 : i32
    %c0_i32_0 = arith.constant 0 : i32
    %c0_i32_1 = arith.constant 0 : i32
    return %c0_i32, %c0_i32_0 : i32, i32
  }
  func.func @transform_6(%arg0: i32, %arg1: i32) -> (i32, i32) {
    %c0_i32 = arith.constant 0 : i32
    %c0_i32_0 = arith.constant 0 : i32
    return %arg0, %c0_i32 : i32, i32
  }
}

</mosaic_0001>

<llo_original>
// kernel: roberta_output_forward.1
$region0: #{roberta_output_forward.1}
  #allocation0 [shape = 'u32[]', space=smem, size = 0x4, offset = 0x4, fixed_abs, tag = 'smem constant byte address 0x4 - core index']
  #allocation1 [shape = 'u32[144,128]{1,0:T(1,128)}', space=vmem, size = 0x12000, scoped, tag = 'internal scratch']
  #allocation2 [shape = 'f32[16,128]{1,0:T(8,128)}', space=vmem, size = 0x2000, scoped, tag = 'scratch operand']
  %s0 = inlined_call_operand.hbm [shape: f32[16,512], index: 0, kind: input, shape index: {}]
  %s1 = inlined_call_operand.hbm [shape: f32[512,128], index: 1, kind: input, shape index: {}]
  %s2 = inlined_call_operand.vmem [shape: f32[1,128], index: 2, kind: input, shape index: {}]
  %s3 = inlined_call_operand.vmem [shape: f32[16,128], index: 3, kind: input, shape index: {}]
  %s4 = inlined_call_operand.vmem [shape: f32[1,128], index: 4, kind: input, shape index: {}]
  %s5 = inlined_call_operand.vmem [shape: f32[1,128], index: 5, kind: input, shape index: {}]
  %s6 = inlined_call_operand.hbm [shape: f32[16,128], index: 6, kind: output, shape index: {}]
  %s7 = sld [smem:[#allocation0]]
  $region50: #{roberta_output_forward.1} parent=0
    _
  %s9 = ssub.s32 1, %s7
  %s10 = scalar_select 0, %s9, %s7
  $region1: #{roberta_output_forward.1} parent=0
    #allocation3 [shape = 'u8[32768]{0}', space=vmem, size = 0x8000, scoped, tag = 'input window, operand 0, single buffered']
    #allocation4 [shape = 's32[1]{0}', space=sflag, size = 0x4, scoped, tag = 'scoped memory for roberta_output_forward.1']
    #allocation5 [shape = 's32[1]{0}', space=sflag, size = 0x4, scoped, tag = 'scoped memory for roberta_output_forward.1']
    #allocation6 [shape = 'u8[262144]{0}', space=vmem, size = 0x40000, scoped, tag = 'input window, operand 1, single buffered']
    #allocation7 [shape = 's32[1]{0}', space=sflag, size = 0x4, scoped, tag = 'scoped memory for roberta_output_forward.1']
    #allocation8 [shape = 'u8[8192]{0}', space=vmem, size = 0x2000, scoped, tag = 'output window, operand 0, single buffered']
    %11 = vsyncpa [#allocation4], 0
    %12 = vsyncpa [#allocation7], 0
    %13 = vsyncpa [#allocation5], 0
    // Predicated region
    $region2: #{roberta_output_forward.1} parent=1 // pred_check
      _
    $region3: #{roberta_output_forward.1} parent=1 // pred_check_branch
      %15 = sbr.rel (0) target = $region5
    $region4: #{roberta_output_forward.1} parent=1 // pred_region
      %s17 = ssub.s32 1024, 1024
      %18 = vsyncadd [#allocation4], %s17
      %s19 = sshll.u32 [#allocation3], 4
      %s20 = int_to_ptr.vmem [resolvable:$true] %s19
      %25 = dma.hbm_to_vmem [thread:$0]  %s0, 1024, %s20, [#allocation4], 512, 512, 32
    $region5: #{roberta_output_forward.1} parent=1 // pred_fallthru
      _
    // Predicated region
    $region6: #{roberta_output_forward.1} parent=1 // pred_check
      _
    $region7: #{roberta_output_forward.1} parent=1 // pred_check_branch
      %27 = sbr.rel (0) target = $region9
    $region8: #{roberta_output_forward.1} parent=1 // pred_region
      %s29 = ssub.s32 8192, 8192
      %30 = vsyncadd [#allocation7], %s29
      %s31 = sshll.u32 [#allocation6], 4
      %s32 = int_to_ptr.vmem [resolvable:$true] %s31
      %37 = dma.hbm_to_vmem [thread:$0]  %s1, 8192, %s32, [#allocation7], 128, 128, 8
    $region9: #{roberta_output_forward.1} parent=1 // pred_fallthru
      _
    // Predicated region
    $region10: #{roberta_output_forward.1} parent=1 // pred_check
      _
    $region11: #{roberta_output_forward.1} parent=1 // pred_check_branch
      %39 = sbr.rel (0) target = $region13
    $region12: #{roberta_output_forward.1} parent=1 // pred_region
      _
    $region13: #{roberta_output_forward.1} parent=1 // pred_fallthru
      _
    // Predicated region
    $region14: #{roberta_output_forward.1} parent=1 // pred_check
      _
    $region15: #{roberta_output_forward.1} parent=1 // pred_check_branch
      %41 = sbr.rel (0) target = $region17
    $region16: #{roberta_output_forward.1} parent=1 // pred_region
      _
    $region17: #{roberta_output_forward.1} parent=1 // pred_fallthru
      _
    // Predicated region
    $region18: #{roberta_output_forward.1} parent=1 // pred_check
      _
    $region19: #{roberta_output_forward.1} parent=1 // pred_check_branch
      %43 = sbr.rel (0) target = $region21
    $region20: #{roberta_output_forward.1} parent=1 // pred_region
      _
    $region21: #{roberta_output_forward.1} parent=1 // pred_fallthru
      _
    // Predicated region
    $region22: #{roberta_output_forward.1} parent=1 // pred_check
      _
    $region23: #{roberta_output_forward.1} parent=1 // pred_check_branch
      %45 = sbr.rel (0) target = $region25
    $region24: #{roberta_output_forward.1} parent=1 // pred_region
      _
    $region25: #{roberta_output_forward.1} parent=1 // pred_fallthru
      _
    // Predicated region
    $region26: #{roberta_output_forward.1} parent=1 // pred_check
      _
    $region27: #{roberta_output_forward.1} parent=1 // pred_check_branch
      %47 = sbr.rel (0) target = $region29
    $region28: #{roberta_output_forward.1} parent=1 // pred_region
      %48 = dma.done [#allocation4], 1024
    $region29: #{roberta_output_forward.1} parent=1 // pred_fallthru
      _
    // Predicated region
    $region30: #{roberta_output_forward.1} parent=1 // pred_check
      _
    $region31: #{roberta_output_forward.1} parent=1 // pred_check_branch
      %50 = sbr.rel (0) target = $region33
    $region32: #{roberta_output_forward.1} parent=1 // pred_region
      %51 = dma.done [#allocation7], 8192
    $region33: #{roberta_output_forward.1} parent=1 // pred_fallthru
      _
    %p52 = scmp.eq.s32.totalorder 0, 0
    // Predicated region
    $region34: #{roberta_output_forward.1} parent=1 // pred_check
      %p53 = pneg %p52
    $region35: #{roberta_output_forward.1} parent=1 // pred_check_branch
      %55 = sbr.rel (%p53) target = $region37
    $region36: #{roberta_output_forward.1} parent=1 // pred_region
      %56 = vst [vmem:[#allocation2] sm:$0xff] 0.0
      %57 = vst [vmem:[#allocation2 + $0x8] sm:$0xff] 0.0
    $region37: #{roberta_output_forward.1} parent=1 // pred_fallthru
      _
    %v58 = vld [vmem:[#allocation2] sm:$0xff]
    %v59 = vld [vmem:[#allocation2 + $0x8] sm:$0xff]
    %v60 = vld [vmem:[#allocation3] sm:$0xff]
    %v61 = vld [vmem:[#allocation3 + $0x8] sm:$0xff]
    %v62 = vld [vmem:[#allocation3 + $0x10] sm:$0xff]
    %v63 = vld [vmem:[#allocation3 + $0x18] sm:$0xff]
    %v64 = vld [vmem:[#allocation3 + $0x20] sm:$0xff]
    %v65 = vld [vmem:[#allocation3 + $0x28] sm:$0xff]
    %v66 = vld [vmem:[#allocation3 + $0x30] sm:$0xff]
    %v67 = vld [vmem:[#allocation3 + $0x38] sm:$0xff]
    %v68 = vld [vmem:[#allocation6] sm:$0xff]
    %v69 = vld [vmem:[#allocation6 + $0x8] sm:$0xff]
    %v70 = vld [vmem:[#allocation6 + $0x10] sm:$0xff]
    %v71 = vld [vmem:[#allocation6 + $0x18] sm:$0xff]
    %v72 = vld [vmem:[#allocation6 + $0x20] sm:$0xff]
    %v73 = vld [vmem:[#allocation6 + $0x28] sm:$0xff]
    %v74 = vld [vmem:[#allocation6 + $0x30] sm:$0xff]
    %v75 = vld [vmem:[#allocation6 + $0x38] sm:$0xff]
    %v76 = vld [vmem:[#allocation6 + $0x40] sm:$0xff]
    %v77 = vld [vmem:[#allocation6 + $0x48] sm:$0xff]
    %v78 = vld [vmem:[#allocation6 + $0x50] sm:$0xff]
    %v79 = vld [vmem:[#allocation6 + $0x58] sm:$0xff]
    %v80 = vld [vmem:[#allocation6 + $0x60] sm:$0xff]
    %v81 = vld [vmem:[#allocation6 + $0x68] sm:$0xff]
    %v82 = vld [vmem:[#allocation6 + $0x70] sm:$0xff]
    %v83 = vld [vmem:[#allocation6 + $0x78] sm:$0xff]
    %v84 = vld [vmem:[#allocation6 + $0x80] sm:$0xff]
    %v85 = vld [vmem:[#allocation6 + $0x88] sm:$0xff]
    %v86 = vld [vmem:[#allocation6 + $0x90] sm:$0xff]
    %v87 = vld [vmem:[#allocation6 + $0x98] sm:$0xff]
    %v88 = vld [vmem:[#allocation6 + $0xa0] sm:$0xff]
    %v89 = vld [vmem:[#allocation6 + $0xa8] sm:$0xff]
    %v90 = vld [vmem:[#allocation6 + $0xb0] sm:$0xff]
    %v91 = vld [vmem:[#allocation6 + $0xb8] sm:$0xff]
    %v92 = vld [vmem:[#allocation6 + $0xc0] sm:$0xff]
    %v93 = vld [vmem:[#allocation6 + $0xc8] sm:$0xff]
    %v94 = vld [vmem:[#allocation6 + $0xd0] sm:$0xff]
    %v95 = vld [vmem:[#allocation6 + $0xd8] sm:$0xff]
    %v96 = vld [vmem:[#allocation6 + $0xe0] sm:$0xff]
    %v97 = vld [vmem:[#allocation6 + $0xe8] sm:$0xff]
    %v98 = vld [vmem:[#allocation6 + $0xf0] sm:$0xff]
    %v99 = vld [vmem:[#allocation6 + $0xf8] sm:$0xff]
    %v100 = vld [vmem:[#allocation6 + $0x100] sm:$0xff]
    %v101 = vld [vmem:[#allocation6 + $0x108] sm:$0xff]
    %v102 = vld [vmem:[#allocation6 + $0x110] sm:$0xff]
    %v103 = vld [vmem:[#allocation6 + $0x118] sm:$0xff]
    %v104 = vld [vmem:[#allocation6 + $0x120] sm:$0xff]
    %v105 = vld [vmem:[#allocation6 + $0x128] sm:$0xff]
    %v106 = vld [vmem:[#allocation6 + $0x130] sm:$0xff]
    %v107 = vld [vmem:[#allocation6 + $0x138] sm:$0xff]
    %v108 = vld [vmem:[#allocation6 + $0x140] sm:$0xff]
    %v109 = vld [vmem:[#allocation6 + $0x148] sm:$0xff]
    %v110 = vld [vmem:[#allocation6 + $0x150] sm:$0xff]
    %v111 = vld [vmem:[#allocation6 + $0x158] sm:$0xff]
    %v112 = vld [vmem:[#allocation6 + $0x160] sm:$0xff]
    %v113 = vld [vmem:[#allocation6 + $0x168] sm:$0xff]
    %v114 = vld [vmem:[#allocation6 + $0x170] sm:$0xff]
    %v115 = vld [vmem:[#allocation6 + $0x178] sm:$0xff]
    %v116 = vld [vmem:[#allocation6 + $0x180] sm:$0xff]
    %v117 = vld [vmem:[#allocation6 + $0x188] sm:$0xff]
    %v118 = vld [vmem:[#allocation6 + $0x190] sm:$0xff]
    %v119 = vld [vmem:[#allocation6 + $0x198] sm:$0xff]
    %v120 = vld [vmem:[#allocation6 + $0x1a0] sm:$0xff]
    %v121 = vld [vmem:[#allocation6 + $0x1a8] sm:$0xff]
    %v122 = vld [vmem:[#allocation6 + $0x1b0] sm:$0xff]
    %v123 = vld [vmem:[#allocation6 + $0x1b8] sm:$0xff]
    %v124 = vld [vmem:[#allocation6 + $0x1c0] sm:$0xff]
    %v125 = vld [vmem:[#allocation6 + $0x1c8] sm:$0xff]
    %v126 = vld [vmem:[#allocation6 + $0x1d0] sm:$0xff]
    %v127 = vld [vmem:[#allocation6 + $0x1d8] sm:$0xff]
    %v128 = vld [vmem:[#allocation6 + $0x1e0] sm:$0xff]
    %v129 = vld [vmem:[#allocation6 + $0x1e8] sm:$0xff]
    %v130 = vld [vmem:[#allocation6 + $0x1f0] sm:$0xff]
    %v131 = vld [vmem:[#allocation6 + $0x1f8] sm:$0xff]
    %132 = vmatprep.subr.mxu0 0.0
    %133 = vmatpush1.msra.mxu0 %v68
    %134 = vmatprep.subr.mxu0 0.0
    %135 = vmatpush1.msra.mxu0 %v69
    %136 = vmatprep.subr.mxu0 0.0
    %137 = vmatpush1.msra.mxu0 %v70
    %138 = vmatprep.subr.mxu0 0.0
    %139 = vmatpush1.msra.mxu0 %v71
    %140 = vmatprep.subr.mxu0 0.0
    %141 = vmatpush1.msra.mxu0 %v72
    %142 = vmatprep.subr.mxu0 0.0
    %143 = vmatpush1.msra.mxu0 %v73
    %144 = vmatprep.subr.mxu0 0.0
    %145 = vmatpush1.msra.mxu0 %v74
    %146 = vmatprep.subr.mxu0 0.0
    %147 = vmatpush1.msra.mxu0 %v75
    %148 = vmatprep.subr.mxu0 0.0
    %149 = vmatpush1.msra.mxu0 %v76
    %150 = vmatprep.subr.mxu0 0.0
    %151 = vmatpush1.msra.mxu0 %v77
    %152 = vmatprep.subr.mxu0 0.0
    %153 = vmatpush1.msra.mxu0 %v78
    %154 = vmatprep.subr.mxu0 0.0
    %155 = vmatpush1.msra.mxu0 %v79
    %156 = vmatprep.subr.mxu0 0.0
    %157 = vmatpush1.msra.mxu0 %v80
    %158 = vmatprep.subr.mxu0 0.0
    %159 = vmatpush1.msra.mxu0 %v81
    %160 = vmatprep.subr.mxu0 0.0
    %161 = vmatpush1.msra.mxu0 %v82
    %162 = vmatprep.subr.mxu0 0.0
    %163 = vmatpush1.msra.mxu0 %v83
    %164 = vmatprep.subr.mxu0 0.0
    %165 = vmatpush1.msra.mxu0 %v84
    %166 = vmatprep.subr.mxu0 0.0
    %167 = vmatpush1.msra.mxu0 %v85
    %168 = vmatprep.subr.mxu0 0.0
    %169 = vmatpush1.msra.mxu0 %v86
    %170 = vmatprep.subr.mxu0 0.0
    %171 = vmatpush1.msra.mxu0 %v87
    %172 = vmatprep.subr.mxu0 0.0
    %173 = vmatpush1.msra.mxu0 %v88
    %174 = vmatprep.subr.mxu0 0.0
    %175 = vmatpush1.msra.mxu0 %v89
    %176 = vmatprep.subr.mxu0 0.0
    %177 = vmatpush1.msra.mxu0 %v90
    %178 = vmatprep.subr.mxu0 0.0
    %179 = vmatpush1.msra.mxu0 %v91
    %180 = vmatprep.subr.mxu0 0.0
    %181 = vmatpush1.msra.mxu0 %v92
    %182 = vmatprep.subr.mxu0 0.0
    %183 = vmatpush1.msra.mxu0 %v93
    %184 = vmatprep.subr.mxu0 0.0
    %185 = vmatpush1.msra.mxu0 %v94
    %186 = vmatprep.subr.mxu0 0.0
    %187 = vmatpush1.msra.mxu0 %v95
    %188 = vmatprep.subr.mxu0 0.0
    %189 = vmatpush1.msra.mxu0 %v96
    %190 = vmatprep.subr.mxu0 0.0
    %191 = vmatpush1.msra.mxu0 %v97
    %192 = vmatprep.subr.mxu0 0.0
    %193 = vmatpush1.msra.mxu0 %v98
    %194 = vmatprep.subr.mxu0 0.0
    %195 = vmatpush1.msra.mxu0 %v99
    %196 = vmatprep.mubr.f32.mxu0 %v61
    %197 = vmatmul.mubr.f32.gmra.mrb[0].mxu0 %v60
    %v198 = vpop.f32.mrb[0].mxu0
    %v199 = vadd.f32 0.0, %v198
    %v200 = vpop.f32.mrb[0].mxu0
    %201 = vmatprep.mubr.f32.mxu0 %v65
    %202 = vmatmul.mubr.f32.gmra.mrb[0].mxu0 %v64
    %v203 = vpop.f32.mrb[0].mxu0
    %v204 = vadd.f32 0.0, %v203
    %v205 = vpop.f32.mrb[0].mxu0
    %206 = vdwg.mxu0
    %207 = vmatprep.subr.mxu0 0.0
    %208 = vmatpush1.msra.mxu0 %v100
    %209 = vmatprep.subr.mxu0 0.0
    %210 = vmatpush1.msra.mxu0 %v101
    %211 = vmatprep.subr.mxu0 0.0
    %212 = vmatpush1.msra.mxu0 %v102
    %213 = vmatprep.subr.mxu0 0.0
    %214 = vmatpush1.msra.mxu0 %v103
    %215 = vmatprep.subr.mxu0 0.0
    %216 = vmatpush1.msra.mxu0 %v104
    %217 = vmatprep.subr.mxu0 0.0
    %218 = vmatpush1.msra.mxu0 %v105
    %219 = vmatprep.subr.mxu0 0.0
    %220 = vmatpush1.msra.mxu0 %v106
    %221 = vmatprep.subr.mxu0 0.0
    %222 = vmatpush1.msra.mxu0 %v107
    %223 = vmatprep.subr.mxu0 0.0
    %224 = vmatpush1.msra.mxu0 %v108
    %225 = vmatprep.subr.mxu0 0.0
    %226 = vmatpush1.msra.mxu0 %v109
    %227 = vmatprep.subr.mxu0 0.0
    %228 = vmatpush1.msra.mxu0 %v110
    %229 = vmatprep.subr.mxu0 0.0
    %230 = vmatpush1.msra.mxu0 %v111
    %231 = vmatprep.subr.mxu0 0.0
    %232 = vmatpush1.msra.mxu0 %v112
    %233 = vmatprep.subr.mxu0 0.0
    %234 = vmatpush1.msra.mxu0 %v113
    %235 = vmatprep.subr.mxu0 0.0
    %236 = vmatpush1.msra.mxu0 %v114
    %237 = vmatprep.subr.mxu0 0.0
    %238 = vmatpush1.msra.mxu0 %v115
    %239 = vmatprep.subr.mxu0 0.0
    %240 = vmatpush1.msra.mxu0 %v116
    %241 = vmatprep.subr.mxu0 0.0
    %242 = vmatpush1.msra.mxu0 %v117
    %243 = vmatprep.subr.mxu0 0.0
    %244 = vmatpush1.msra.mxu0 %v118
    %245 = vmatprep.subr.mxu0 0.0
    %246 = vmatpush1.msra.mxu0 %v119
    %247 = vmatprep.subr.mxu0 0.0
    %248 = vmatpush1.msra.mxu0 %v120
    %249 = vmatprep.subr.mxu0 0.0
    %250 = vmatpush1.msra.mxu0 %v121
    %251 = vmatprep.subr.mxu0 0.0
    %252 = vmatpush1.msra.mxu0 %v122
    %253 = vmatprep.subr.mxu0 0.0
    %254 = vmatpush1.msra.mxu0 %v123
    %255 = vmatprep.subr.mxu0 0.0
    %256 = vmatpush1.msra.mxu0 %v124
    %257 = vmatprep.subr.mxu0 0.0
    %258 = vmatpush1.msra.mxu0 %v125
    %259 = vmatprep.subr.mxu0 0.0
    %260 = vmatpush1.msra.mxu0 %v126
    %261 = vmatprep.subr.mxu0 0.0
    %262 = vmatpush1.msra.mxu0 %v127
    %263 = vmatprep.subr.mxu0 0.0
    %264 = vmatpush1.msra.mxu0 %v128
    %265 = vmatprep.subr.mxu0 0.0
    %266 = vmatpush1.msra.mxu0 %v129
    %267 = vmatprep.subr.mxu0 0.0
    %268 = vmatpush1.msra.mxu0 %v130
    %269 = vmatprep.subr.mxu0 0.0
    %270 = vmatpush1.msra.mxu0 %v131
    %271 = vmatprep.mubr.f32.mxu0 %v63
    %272 = vmatmul.mubr.f32.gmra.mrb[0].mxu0 %v62
    %v273 = vpop.f32.mrb[0].mxu0
    %v274 = vadd.f32 %v199, %v273
    %v275 = vpop.f32.mrb[0].mxu0
    %276 = vmatprep.mubr.f32.mxu0 %v67
    %277 = vmatmul.mubr.f32.gmra.mrb[0].mxu0 %v66
    %v278 = vpop.f32.mrb[0].mxu0
    %v279 = vadd.f32 %v204, %v278
    %v280 = vpop.f32.mrb[0].mxu0
    %281 = vdwg.mxu0
    %v282 = vadd.f32 %v58, %v274
    %v283 = vadd.f32 %v59, %v279
    %284 = vst [vmem:[#allocation2] sm:$0xff] %v282
    %285 = vst [vmem:[#allocation2 + $0x8] sm:$0xff] %v283
    // Predicated region
    $region38: #{roberta_output_forward.1} parent=1 // pred_check
      %p286 = pneg %p52
    $region39: #{roberta_output_forward.1} parent=1 // pred_check_branch
      %288 = sbr.rel (%p286) target = $region41
    $region40: #{roberta_output_forward.1} parent=1 // pred_region
      %v289 = vld [vmem:[#allocation2] sm:$0xff]
      %v290 = vld [vmem:[#allocation2 + $0x8] sm:$0xff]
      %v291 = vld [vmem:[%s2] sm:$0x1]
      %v293 = vlaneseq
      %v294 = vshrl.u32 %v293, 7
      %v295 = vsub.s32 0, %v294
      %v296 = vrot.slane %v291, %v295
      %v298 = vadd.f32 %v289, %v296
      %v299 = vadd.f32 %v290, %v296
      %v300 = vld [vmem:[%s3] sm:$0xff]
      %v301 = vld [vmem:[%s3 + $0x8] sm:$0xff]
      %v302 = vadd.f32 %v298, %v300
      %v303 = vadd.f32 %v299, %v301
      %304 = vadd.xlane.f32.xlu0 %v302
      %v305 = vpop.xlane.xlu0 %304
      %306 = vadd.xlane.f32.xlu0 %v303
      %v307 = vpop.xlane.xlu0 %306
      %v308 = vrcp.pop 128.0
      %v309 = vmul.f32 %v305, %v308
      %v310 = vmul.f32 %v307, %v308
      %v311 = vsub.f32 %v302, %v309
      %v312 = vsub.f32 %v303, %v310
      %v313 = vmul.f32 %v311, %v311
      %v314 = vmul.f32 %v312, %v312
      %315 = vadd.xlane.f32.xlu0 %v313
      %v316 = vpop.xlane.xlu0 %315
      %317 = vadd.xlane.f32.xlu0 %v314
      %v318 = vpop.xlane.xlu0 %317
      %v319 = vmul.f32 %v316, %v308
      %v320 = vmul.f32 %v318, %v308
      %v321 = vadd.f32 %v319, 1e-05
      %v322 = vadd.f32 %v320, 1e-05
      %v323 = vrsqrt.pop %v321
      %v324 = vrsqrt.pop %v322
      %v325 = vmul.f32 %v311, %v323
      %v326 = vmul.f32 %v312, %v324
      %v327 = vld [vmem:[%s4] sm:$0x1]
      %v329 = vlaneseq
      %v330 = vshrl.u32 %v329, 7
      %v331 = vsub.s32 0, %v330
      %v332 = vrot.slane %v327, %v331
      %v334 = vmul.f32 %v325, %v332
      %v335 = vmul.f32 %v326, %v332
      %v336 = vld [vmem:[%s5] sm:$0x1]
      %v338 = vlaneseq
      %v339 = vshrl.u32 %v338, 7
      %v340 = vsub.s32 0, %v339
      %v341 = vrot.slane %v336, %v340
      %v343 = vadd.f32 %v334, %v341
      %v344 = vadd.f32 %v335, %v341
      %345 = vst [vmem:[#allocation8] sm:$0xff] %v343
      %346 = vst [vmem:[#allocation8 + $0x8] sm:$0xff] %v344
    $region41: #{roberta_output_forward.1} parent=1 // pred_fallthru
      _
    // Predicated region
    $region42: #{roberta_output_forward.1} parent=1 // pred_check
      _
    $region43: #{roberta_output_forward.1} parent=1 // pred_check_branch
      %348 = sbr.rel (0) target = $region45
    $region44: #{roberta_output_forward.1} parent=1 // pred_region
      %s350 = ssub.s32 256, 256
      %351 = vsyncadd [#allocation5], %s350
      %s352 = sshll.u32 [#allocation8], 4
      %s353 = int_to_ptr.vmem [resolvable:$true] %s352
      %358 = dma.vmem_to_hbm [thread:$0]  %s353, 256, %s6, [#allocation5], 128, 128, 8
    $region45: #{roberta_output_forward.1} parent=1 // pred_fallthru
      _
    // Predicated region
    $region46: #{roberta_output_forward.1} parent=1 // pred_check
      _
    $region47: #{roberta_output_forward.1} parent=1 // pred_check_branch
      %360 = sbr.rel (0) target = $region49
    $region48: #{roberta_output_forward.1} parent=1 // pred_region
      %361 = dma.done [#allocation5], 256
    $region49: #{roberta_output_forward.1} parent=1 // pred_fallthru
      _
    %362 = vsyncpa [#allocation4], 1
    %363 = vsyncpa [#allocation7], 1
    %364 = vsyncpa [#allocation5], 1

</llo_original>
